<compile_context>
chip_gen: v7x
topology: tpu7x:2x2x1
jax: 0.10.0
libtpu: 0.0.40
codegen_flags: <defaults>
</compile_context>

<pallas_src>
import functools

import jax
import jax.numpy as jnp
from jax.experimental import pallas as pl
from jax.experimental.pallas import tpu as pltpu

_MIB = 1024 * 1024


def _tpu_generation():
    """(num_tensorcores_per_chip, vmem_capacity_bytes) with safe fallbacks."""
    kind = ""
    try:
        kind = jax.devices()[0].device_kind.lower()
    except Exception:
        pass
    is_v7 = "v7" in kind
    num_tc = 2 if is_v7 else 1            # megacore axis only pays off on v7x
    vmem_cap = 64 * _MIB if is_v7 else 128 * _MIB
    try:                                   # prefer the authoritative query
        vmem_cap = int(pltpu.get_tpu_info().vmem_capacity_bytes)
    except Exception:
        pass
    return num_tc, vmem_cap


def _reduce_max_kernel(x_ref, o_ref, acc_ref, *, steps_per_shard, tile_m,
                       total_rows, needs_mask):
    p = pl.program_id(0)          # parallel shard index (megacore axis on v7x)
    s = pl.program_id(1)          # reduction step within the shard

    x = x_ref[...]                # (tile_m, N) block, input dtype

    if needs_mask:
        # Un-clamped global block index -> number of valid rows in this block.
        # Rows past M are Pallas OOB padding (undefined data); mask to -inf.
        gi = p * steps_per_shard + s
        valid = total_rows - gi * tile_m
        row = jax.lax.broadcasted_iota(jnp.int32, x.shape, 0)
        x = jnp.where(row < valid, x, jnp.array(-jnp.inf, dtype=x.dtype))

    # Row fold only (elementwise vreg maxima); defer the cross-lane reduce.
    col_max = jnp.max(x, axis=0, keepdims=True).astype(jnp.float32)  # (1, N)

    @pl.when(s == 0)
    def _():
        acc_ref[...] = col_max    # first step of the shard: plain write

    @pl.when(s > 0)
    def _():
        acc_ref[...] = jnp.maximum(acc_ref[...], col_max)

    # One XLU lane reduce + one (1, 1) store per shard, on the final step.
    @pl.when(s == pl.num_programs(1) - 1)
    def _():
        o_ref[...] = jnp.max(acc_ref[...], axis=1, keepdims=True)


def reduce_max_all_dims(a, *, target_block_bytes=16 * _MIB,
                        min_kernel_bytes=2 * _MIB, num_shards=None):
    """Equivalent of torch.ops.aten.max(a): 0-d max over all elements."""
    assert a.ndim == 3, "module spec is a rank-3 tensor"
    assert jnp.issubdtype(a.dtype, jnp.floating), "float spec (uses -inf mask)"

    total_bytes = a.size * a.dtype.itemsize
    if total_bytes <= min_kernel_bytes:
        # Tiny tensors: custom-call dispatch dominates; XLA's reduce wins.
        return jnp.max(a)

    N = a.shape[-1]
    x = a.reshape(-1, N)          # (M, N): free reshape, keeps N lane-mapped
    M = x.shape[0]
    itemsize = x.dtype.itemsize
    bytes_per_row = N * itemsize

    num_tc, vmem_cap = _tpu_generation()
    vmem_budget = int(vmem_cap * 3 // 4)          # leave compiler headroom
    # Double-buffered input (2x block) + tiny output + ~1 MiB slack must fit.
    max_block_bytes = max(_MIB, (vmem_budget - _MIB) // 2)
    target_block_bytes = min(int(target_block_bytes), max_block_bytes)

    if M * bytes_per_row <= target_block_bytes:
        tile_m = M                # whole array in a single block
    else:
        tile_m = max(8, (target_block_bytes // bytes_per_row) // 8 * 8)
        tile_m = min(tile_m, M)

    total_blocks = pl.cdiv(M, tile_m)
    if num_shards is None:
        num_shards = num_tc       # 2 only on v7x; a fake split wastes DMA on 1 TC
    num_shards = max(1, min(int(num_shards), total_blocks))
    steps = pl.cdiv(total_blocks, num_shards)
    needs_mask = (M % tile_m) != 0

    kernel = functools.partial(
        _reduce_max_kernel,
        steps_per_shard=steps,
        tile_m=tile_m,
        total_rows=M,
        needs_mask=needs_mask,
    )

    block_bytes = tile_m * bytes_per_row
    vmem_limit = int(min(max(32 * _MIB, 2 * block_bytes + 2 * _MIB),
                         vmem_budget))

    partials = pl.pallas_call(
        kernel,
        out_shape=jax.ShapeDtypeStruct((1, num_shards), jnp.float32),
        grid_spec=pltpu.PrefetchScalarGridSpec(
            num_scalar_prefetch=0,
            grid=(num_shards, steps),
            in_specs=[
                pl.BlockSpec(
                    (tile_m, N),
                    lambda p, s: (jnp.minimum(p * steps + s, total_blocks - 1), 0),
                ),
            ],
            out_specs=pl.BlockSpec((1, 1), lambda p, s: (0, p)),
            scratch_shapes=[pltpu.VMEM((1, N), jnp.float32)],
        ),
        compiler_params=pltpu.CompilerParams(
            dimension_semantics=("parallel", "arbitrary"),
            vmem_limit_bytes=vmem_limit,
        ),
        cost_estimate=pl.CostEstimate(
            flops=M * N, transcendentals=0,
            bytes_accessed=M * N * itemsize + 4 * num_shards),
    )(x)

    return jnp.max(partials).astype(a.dtype)   # tiny (1, num_shards) combine


if __name__ == "__main__":
    key = jax.random.PRNGKey(0)
    k1, k2, k3 = jax.random.split(key, 3)

    # 1) Small rank-3 float32 input (module annotation) -> XLA fast path.
    a = jax.random.normal(k1, (2, 16, 128), dtype=jnp.float32)
    out = jax.block_until_ready(reduce_max_all_dims(a))
    ref = jnp.max(a)
    assert out.shape == ref.shape == ()
    assert out.dtype == jnp.float32
    assert jnp.allclose(out, ref)

    # 2) Same input forced through the single-block kernel path.
    out2 = jax.block_until_ready(reduce_max_all_dims(a, min_kernel_bytes=0))
    assert jnp.allclose(out2, ref)

    # 3) Tiled + ragged-tail masking path (tiny block budget, default shards).
    b = jax.random.normal(k2, (3, 33, 96), dtype=jnp.float32)
    out_b = jax.block_until_ready(
        reduce_max_all_dims(b, target_block_bytes=4096, min_kernel_bytes=0))
    assert jnp.allclose(out_b, jnp.max(b))

    # 4) Ragged + explicit 2-shard path with an odd block count (exercises the
    #    clamped, fully-masked duplicate block, as used on v7x megacore).
    c = jax.random.normal(k3, (7, 17, 128), dtype=jnp.float32)
    out_c = jax.block_until_ready(
        reduce_max_all_dims(c, target_block_bytes=4096, min_kernel_bytes=0,
                            num_shards=2))
    assert jnp.allclose(out_c, jnp.max(c))

    print("KERNEL_OK")
</pallas_src>

<mosaic_0001>
module attributes {stable_mosaic.version = 11 : i64} {
  func.func @_reduce_max_kernel(%arg0: i32, %arg1: i32, %arg2: memref<32x128xf32, #tpu.memory_space<vmem>>, %arg3: memref<1x1xf32, #tpu.memory_space<vmem>>, %arg4: memref<1x128xf32, #tpu.memory_space<vmem>>) attributes {dimension_semantics = [#tpu.dimension_semantics<parallel>, #tpu.dimension_semantics<arbitrary>], iteration_bounds = array<i64: 1, 1>, scalar_prefetch = 0 : i64, scratch_operands = 1 : i64, tpu.core_type = #tpu.core_type<tc>, window_params = [{transform_indices = @transform_0, window_bounds = array<i64: 32, 128>}, {transform_indices = @transform_1, window_bounds = array<i64: 1, 1>}]} {
    %c0 = arith.constant 0 : index
    %c0_0 = arith.constant 0 : index
    %0 = vector.load %arg2[%c0, %c0_0] : memref<32x128xf32, #tpu.memory_space<vmem>>, vector<32x128xf32>
    %cst = arith.constant dense<0xFF800000> : vector<128xf32>
    %1 = vector.multi_reduction <maximumf>, %0, %cst [0] : vector<32x128xf32> to vector<128xf32>
    %2 = vector.shape_cast %1 : vector<128xf32> to vector<1x128xf32>
    %c0_i32 = arith.constant 0 : i32
    %3 = arith.cmpi eq, %arg1, %c0_i32 : i32
    %4 = arith.extui %3 : i1 to i32
    %c0_i32_1 = arith.constant 0 : i32
    %5 = arith.cmpi ne, %4, %c0_i32_1 : i32
    scf.if %5 {
      %c0_6 = arith.constant 0 : index
      %c0_7 = arith.constant 0 : index
      %12 = vector.load %arg4[%c0_6, %c0_7] : memref<1x128xf32, #tpu.memory_space<vmem>>, vector<1x128xf32>
      tpu.vector_store %arg4[%c0_6, %c0_7], %2 {strides = array<i32>} : memref<1x128xf32, #tpu.memory_space<vmem>>, vector<1x128xf32>,
    } else {
    }
    %c0_i32_2 = arith.constant 0 : i32
    %6 = arith.cmpi sgt, %arg1, %c0_i32_2 : i32
    %7 = arith.extui %6 : i1 to i32
    %c0_i32_3 = arith.constant 0 : i32
    %8 = arith.cmpi ne, %7, %c0_i32_3 : i32
    scf.if %8 {
      %c0_6 = arith.constant 0 : index
      %c0_7 = arith.constant 0 : index
      %12 = vector.load %arg4[%c0_6, %c0_7] : memref<1x128xf32, #tpu.memory_space<vmem>>, vector<1x128xf32>
      %13 = arith.maximumf %12, %2 : vector<1x128xf32>
      %c0_8 = arith.constant 0 : index
      %c0_9 = arith.constant 0 : index
      %14 = vector.load %arg4[%c0_8, %c0_9] : memref<1x128xf32, #tpu.memory_space<vmem>>, vector<1x128xf32>
      tpu.vector_store %arg4[%c0_8, %c0_9], %13 {strides = array<i32>} : memref<1x128xf32, #tpu.memory_space<vmem>>, vector<1x128xf32>,
    } else {
    }
    %c0_i32_4 = arith.constant 0 : i32
    %9 = arith.cmpi eq, %arg1, %c0_i32_4 : i32
    %10 = arith.extui %9 : i1 to i32
    %c0_i32_5 = arith.constant 0 : i32
    %11 = arith.cmpi ne, %10, %c0_i32_5 : i32
    scf.if %11 {
      %c0_6 = arith.constant 0 : index
      %c0_7 = arith.constant 0 : index
      %12 = vector.load %arg4[%c0_6, %c0_7] : memref<1x128xf32, #tpu.memory_space<vmem>>, vector<1x128xf32>
      %cst_8 = arith.constant dense<0xFF800000> : vector<1xf32>
      %13 = vector.multi_reduction <maximumf>, %12, %cst_8 [1] : vector<1x128xf32> to vector<1xf32>
      %14 = vector.shape_cast %13 : vector<1xf32> to vector<1x1xf32>
      %c0_9 = arith.constant 0 : index
      %c0_10 = arith.constant 0 : index
      %15 = vector.load %arg3[%c0_9, %c0_10] : memref<1x1xf32, #tpu.memory_space<vmem>>, vector<1x1xf32>
      tpu.vector_store %arg3[%c0_9, %c0_10], %14 {strides = array<i32>} : memref<1x1xf32, #tpu.memory_space<vmem>>, vector<1x1xf32>,
    } else {
    }
    return
  }
  func.func @transform_0(%arg0: i32, %arg1: i32) -> (i32, i32) {
    %c1_i32 = arith.constant 1 : i32
    %0 = arith.muli %arg0, %c1_i32 : i32
    %1 = arith.addi %0, %arg1 : i32
    %c0_i32 = arith.constant 0 : i32
    %2 = arith.minsi %1, %c0_i32 : i32
    %c0_i32_0 = arith.constant 0 : i32
    %c0_i32_1 = arith.constant 0 : i32
    return %2, %c0_i32_0 : i32, i32
  }
  func.func @transform_1(%arg0: i32, %arg1: i32) -> (i32, i32) {
    %c0_i32 = arith.constant 0 : i32
    %c0_i32_0 = arith.constant 0 : i32
    return %c0_i32, %arg0 : i32, i32
  }
}

</mosaic_0001>

<llo_original>
// kernel: tpu_custom_call.1
$region0: #{tpu_custom_call.1}
  #allocation0 [shape = 'u32[]', space=smem, size = 0x4, offset = 0x4, fixed_abs, tag = 'smem constant byte address 0x4 - core index']
  #allocation1 [shape = 'u32[144,128]{1,0:T(1,128)}', space=vmem, size = 0x12000, scoped, tag = 'internal scratch']
  #allocation2 [shape = 'f32[1,128]{1,0:T(1,128)}', space=vmem, size = 0x200, scoped, tag = 'scratch operand']
  %s0 = inlined_call_operand.hbm [shape: f32[32,128], index: 0, kind: input, shape index: {}]
  %s1 = inlined_call_operand.hbm [shape: f32[1,1], index: 1, kind: output, shape index: {}]
  %s2 = sld [smem:[#allocation0]]
  $region30: #{tpu_custom_call.1} parent=0
    _
  %s4 = ssub.s32 1, %s2
  %s5 = scalar_select 0, %s4, %s2
  $region1: #{tpu_custom_call.1} parent=0
    #allocation3 [shape = 'u8[16384]{0}', space=vmem, size = 0x4000, scoped, tag = 'input window, operand 0, single buffered']
    #allocation4 [shape = 's32[1]{0}', space=sflag, size = 0x4, scoped, tag = 'scoped memory for tpu_custom_call.1']
    #allocation5 [shape = 's32[1]{0}', space=sflag, size = 0x4, scoped, tag = 'scoped memory for tpu_custom_call.1']
    #allocation6 [shape = 'u8[512]{0}', space=vmem, size = 0x400, scoped, tag = 'output window, operand 0, single buffered']
    %6 = vsyncpa [#allocation4], 0
    %7 = vsyncpa [#allocation5], 0
    // Predicated region
    $region2: #{tpu_custom_call.1} parent=1 // pred_check
      _
    $region3: #{tpu_custom_call.1} parent=1 // pred_check_branch
      %9 = sbr.rel (0) target = $region5
    $region4: #{tpu_custom_call.1} parent=1 // pred_region
      %s10 = sadd.s32 0, 0
      %p11 = scmp.lt.s32.totalorder %s10, 0
      %s12 = scalar_select %p11, %s10, 0
      %s13 = smul.u32 4, %s12
      %s15 = ssub.s32 512, 512
      %16 = vsyncadd [#allocation4], %s15
      %s17 = smul.addr %s13, 128
      %s18 = scalar_lea.hbm %s0, %s17
      %s19 = sshll.u32 [#allocation3], 4
      %s20 = int_to_ptr.vmem [resolvable:$true] %s19
      %25 = dma.hbm_to_vmem [thread:$0]  %s18, 512, %s20, [#allocation4], 128, 128, 8
    $region5: #{tpu_custom_call.1} parent=1 // pred_fallthru
      _
    // Predicated region
    $region6: #{tpu_custom_call.1} parent=1 // pred_check
      _
    $region7: #{tpu_custom_call.1} parent=1 // pred_check_branch
      %27 = sbr.rel (0) target = $region9
    $region8: #{tpu_custom_call.1} parent=1 // pred_region
      %28 = dma.done [#allocation4], 512
    $region9: #{tpu_custom_call.1} parent=1 // pred_fallthru
      _
    %s29 = sadd.s32 0, 0
    %p30 = scmp.lt.s32.totalorder %s29, 0
    %s31 = scalar_select %p30, %s29, 0
    %s32 = smul.u32 4, %s31
    %v33 = vld [vmem:[#allocation3] sm:$0xff]
    %v34 = vld [vmem:[#allocation3 + $0x8] sm:$0xff]
    %v35 = vld [vmem:[#allocation3 + $0x10] sm:$0xff]
    %v36 = vld [vmem:[#allocation3 + $0x18] sm:$0xff]
    %v37 = vmax.f32 %v33, %v34
    %v38 = vmax.f32 %v35, %v36
    %v39 = vmax.f32 %v37, %v38
    %v40 = vrot.slane %v39, 4
    %v41 = vmax.f32 %v39, %v40
    %v42 = vrot.slane %v41, 2
    %v43 = vmax.f32 %v41, %v42
    %v44 = vrot.slane %v43, 1
    %v45 = vmax.f32 %v43, %v44
    %p46 = scmp.eq.s32.totalorder 0, 0
    // Predicated region
    $region10: #{tpu_custom_call.1} parent=1 // pred_check
      %p47 = pneg %p46
    $region11: #{tpu_custom_call.1} parent=1 // pred_check_branch
      %49 = sbr.rel (%p47) target = $region13
    $region12: #{tpu_custom_call.1} parent=1 // pred_region
      %50 = vst [vmem:[#allocation2] sm:$0x1] %v45
    $region13: #{tpu_custom_call.1} parent=1 // pred_fallthru
      _
    %p51 = scmp.gt.s32.totalorder 0, 0
    // Predicated region
    $region14: #{tpu_custom_call.1} parent=1 // pred_check
      %p52 = pneg %p51
    $region15: #{tpu_custom_call.1} parent=1 // pred_check_branch
      %54 = sbr.rel (%p52) target = $region17
    $region16: #{tpu_custom_call.1} parent=1 // pred_region
      %v55 = vld [vmem:[#allocation2] sm:$0x1]
      %v56 = vmax.f32 %v55, %v45
      %57 = vst [vmem:[#allocation2] sm:$0x1] %v56
    $region17: #{tpu_custom_call.1} parent=1 // pred_fallthru
      _
    // Predicated region
    $region18: #{tpu_custom_call.1} parent=1 // pred_check
      %p58 = pneg %p46
    $region19: #{tpu_custom_call.1} parent=1 // pred_check_branch
      %60 = sbr.rel (%p58) target = $region21
    $region20: #{tpu_custom_call.1} parent=1 // pred_region
      %v61 = vld [vmem:[#allocation2] sm:$0x1]
      %vm62 = vcmask 1040384
      %v63 = vsel %vm62, %v61, -inf
      %64 = vmax.xlane.f32.xlu0 %v63
      %v65 = vpop.xlane.xlu0 %64
      %vm66 = vcmask 0
      %67 = vst.msk [vmem:[#allocation6] sm:$0x1] %vm66, %v65
    $region21: #{tpu_custom_call.1} parent=1 // pred_fallthru
      _
    // Predicated region
    $region22: #{tpu_custom_call.1} parent=1 // pred_check
      _
    $region23: #{tpu_custom_call.1} parent=1 // pred_check_branch
      %69 = sbr.rel (0) target = $region25
    $region24: #{tpu_custom_call.1} parent=1 // pred_region
      %s71 = ssub.s32 16, 16
      %72 = vsyncadd [#allocation5], %s71
      %s74 = sshll.u32 [#allocation6], 4
      %s75 = int_to_ptr.vmem [resolvable:$true] %s74
      %77 = dma.vmem_to_hbm [thread:$0]  %s75, 16, %s1, [#allocation5]
    $region25: #{tpu_custom_call.1} parent=1 // pred_fallthru
      _
    // Predicated region
    $region26: #{tpu_custom_call.1} parent=1 // pred_check
      _
    $region27: #{tpu_custom_call.1} parent=1 // pred_check_branch
      %79 = sbr.rel (0) target = $region29
    $region28: #{tpu_custom_call.1} parent=1 // pred_region
      %80 = dma.done [#allocation5], 16
    $region29: #{tpu_custom_call.1} parent=1 // pred_fallthru
      _
    %81 = vsyncpa [#allocation4], 1
    %82 = vsyncpa [#allocation5], 1

</llo_original>
